<compile_context>
chip_gen: v7x
topology: tpu7x:2x2x1
jax: 0.10.0
libtpu: 0.0.40
codegen_flags: <defaults>
</compile_context>

<pallas_src>
import functools

import jax
import jax.numpy as jnp
from jax.experimental import pallas as pl
from jax.experimental.pallas import tpu as pltpu


def _round_up(x, m):
    return ((x + m - 1) // m) * m


# ----------------------- tiled, pipelined MXU matmul ------------------------

def _matmul_kernel(a_ref, b_ref, o_ref, acc_ref):
    @pl.when(pl.program_id(2) == 0)
    def _init():
        acc_ref[...] = jnp.zeros_like(acc_ref)

    acc_ref[...] += jnp.dot(a_ref[...], b_ref[...],
                            preferred_element_type=jnp.float32)

    @pl.when(pl.program_id(2) == pl.num_programs(2) - 1)
    def _flush():
        o_ref[...] = acc_ref[...].astype(o_ref.dtype)


def matmul_pallas(a, b, *, tm=256, tk=512, tn=512):
    """(M, K) @ (K, N) -> (M, N) f32.

    Inputs are cast to bf16 (f32 accumulation on the MXU) before the kernel so
    HBM traffic into the pipeline is halved.  M/K/N are zero-padded so every
    block is (16, 128)-aligned and the output tile is lane-dense; padding is
    sliced off on return (the slice fuses into the consumer's copy fusion).
    """
    M, K = a.shape
    K2, N = b.shape
    assert K == K2

    tm = min(tm, _round_up(M, 16))
    tk = min(tk, _round_up(K, 128))
    tn = min(tn, _round_up(N, 128))
    Mp, Kp, Np = _round_up(M, tm), _round_up(K, tk), _round_up(N, tn)

    a_p = a.astype(jnp.bfloat16)
    b_p = b.astype(jnp.bfloat16)
    if (Mp, Kp) != (M, K):
        a_p = jnp.pad(a_p, ((0, Mp - M), (0, Kp - K)))
    if (Kp, Np) != (K, N):
        b_p = jnp.pad(b_p, ((0, Kp - K), (0, Np - N)))

    grid = (Mp // tm, Np // tn, Kp // tk)
    out = pl.pallas_call(
        _matmul_kernel,
        out_shape=jax.ShapeDtypeStruct((Mp, Np), jnp.float32),
        grid=grid,
        in_specs=[pl.BlockSpec((tm, tk), lambda i, j, k: (i, k)),
                  pl.BlockSpec((tk, tn), lambda i, j, k: (k, j))],
        out_specs=pl.BlockSpec((tm, tn), lambda i, j, k: (i, j)),
        scratch_shapes=[pltpu.VMEM((tm, tn), jnp.float32)],
        compiler_params=pltpu.CompilerParams(
            dimension_semantics=("parallel", "parallel", "arbitrary"),
            vmem_limit_bytes=32 * 1024 * 1024),
        cost_estimate=pl.CostEstimate(
            flops=2 * Mp * Np * Kp,
            transcendentals=0,
            bytes_accessed=Mp * Kp * 2 + Kp * Np * 2 + Mp * Np * 4),
    )(a_p, b_p)
    return out[:M, :N]


# ------------------- fused InstanceNorm2d + ReLU (tiled) --------------------

def _instnorm_relu_kernel(x_ref, o_ref, *, true_count):
    # Each row = one (batch, channel) instance; spatial axis (last) may be
    # zero-padded, so normalize sums by the TRUE element count.
    # Biased variance, eps=1e-5, no affine -> nn.InstanceNorm2d defaults.
    x = x_ref[...]
    inv_n = 1.0 / true_count
    s = jnp.sum(x, axis=-1, keepdims=True)
    ss = jnp.sum(x * x, axis=-1, keepdims=True)
    mean = s * inv_n
    var = ss * inv_n - mean * mean
    inv = jax.lax.rsqrt(var + 1e-5)            # EUP slot, ~free vs mem-bound pass
    o_ref[...] = jnp.maximum((x - mean) * inv, 0.0)


def instnorm_relu_pallas(x, true_count):
    """x: (R, Sp) f32 with Sp a multiple of 128 (zero-padded from true_count)."""
    R, Sp = x.shape
    # Row tile: multiple of 8, ~2 MiB per block (input + output double-buffered
    # stays well inside the scoped-VMEM default on v5e/v6e/v7x).
    tile_r = max(8, min(256, (2 * 1024 * 1024) // (Sp * 4) // 8 * 8))
    tile_r = min(tile_r, _round_up(R, 8))
    Rp = _round_up(R, tile_r)
    if Rp != R:
        x = jnp.pad(x, ((0, Rp - R), (0, 0)))

    out = pl.pallas_call(
        functools.partial(_instnorm_relu_kernel, true_count=float(true_count)),
        out_shape=jax.ShapeDtypeStruct((Rp, Sp), jnp.float32),
        grid=(Rp // tile_r,),
        in_specs=[pl.BlockSpec((tile_r, Sp), lambda i: (i, 0))],
        out_specs=pl.BlockSpec((tile_r, Sp), lambda i: (i, 0)),
        compiler_params=pltpu.CompilerParams(
            dimension_semantics=("parallel",),
            vmem_limit_bytes=32 * 1024 * 1024),
        cost_estimate=pl.CostEstimate(
            flops=4 * Rp * Sp, transcendentals=Rp,
            bytes_accessed=2 * Rp * Sp * 4),
    )(x)
    return out[:R, :]


# ------------------------------ UNetUp forward ------------------------------

def unet_up_forward(x, weight, skip_input=None, pad=None):
    """x: (N, Cin, H, W); weight: (Cin, Cout, 4, 4) as in nn.ConvTranspose2d."""
    N, Cin, H, W = x.shape
    Cin2, Cout, KH, KW = weight.shape
    assert (Cin2, KH, KW) == (Cin, 4, 4)
    Ho2, Wo2 = H + 1, W + 1                 # per-parity output grid
    Hout, Wout = 2 * Ho2, 2 * Wo2           # = (H-1)*2 + 4

    # --- ConvTranspose2d(k=4, s=2, no bias) via phase decomposition ---
    # out[n, co, 2a+p, 2b+q] =
    #   sum_{u,v in {0,1}, ci} x_pad[n, a+u, b+v, ci] * w[ci, co, p+2(1-u), q+2(1-v)]
    # i.e. one matmul: A (N*Ho2*Wo2, 4*Cin) @ B (4*Cin, 4*Cout).
    # TODO(synk): the NCHW->NHWC transpose and patch/phase reshuffles remain
    # cheap XLA copy fusions; they could be folded into the kernel DMAs with
    # Element index maps if they ever dominate.
    x_pad = jnp.pad(x.transpose(0, 2, 3, 1), ((0, 0), (1, 1), (1, 1), (0, 0)))
    patches = [x_pad[:, u:u + Ho2, v:v + Wo2, :] for u in (0, 1) for v in (0, 1)]
    A = jnp.stack(patches, axis=3).reshape(N * Ho2 * Wo2, 4 * Cin)

    w_r = weight.reshape(Cin, Cout, 2, 2, 2, 2)          # (ci, co, hh, p, wh, q)
    w_f = jnp.flip(w_r, axis=(2, 4))                     # hh -> u, wh -> v
    B = w_f.transpose(2, 4, 0, 3, 5, 1).reshape(4 * Cin, 4 * Cout)

    y = matmul_pallas(A, B)                              # (N*Ho2*Wo2, 4*Cout) f32
    y6 = y.reshape(N, Ho2, Wo2, 2, 2, Cout)              # (n, a, b, p, q, co)
    conv = y6.transpose(0, 5, 1, 3, 2, 4).reshape(N, Cout, Hout, Wout)

    # --- InstanceNorm2d + ReLU (fused, tiled, lane-dense spatial axis) ---
    S = Hout * Wout
    Sp = _round_up(S, 128)
    flat = conv.reshape(N * Cout, S)
    if Sp != S:
        flat = jnp.pad(flat, ((0, 0), (0, Sp - S)))      # fuses with the transpose copy
    normed = instnorm_relu_pallas(flat, true_count=S)[:, :S]
    normed = normed.reshape(N, Cout, Hout, Wout)

    # TODO(synk): Dropout omitted — dropout=0.0 in this instantiation (and
    # eval-mode nn.Dropout is identity anyway).

    # --- optional F.pad (zero padding, pad = (left, right, top, bottom)) ---
    if pad is not None:
        pw_l, pw_r = pad[0], pad[1]
        ph_t, ph_b = (pad[2], pad[3]) if len(pad) >= 4 else (0, 0)
        normed = jnp.pad(normed, ((0, 0), (0, 0), (ph_t, ph_b), (pw_l, pw_r)))

    # --- optional skip concat along channels ---
    if skip_input is not None:
        # TODO(synk): placement into the concatenated slab could be folded into
        # the norm kernel's out_specs, but that makes the output lane-sparse
        # (last dim ~Wout < 128 masked stores), so it stays as one XLA fusion.
        normed = jnp.concatenate([normed, skip_input.astype(normed.dtype)], axis=1)
    return normed


# ---------------------------- pure-JAX reference ----------------------------

def unet_up_reference(x, weight, skip_input=None, pad=None):
    Cin, Cout, KH, KW = weight.shape
    w_t = jnp.flip(weight, axis=(2, 3)).transpose(1, 0, 2, 3)  # (Cout, Cin, KH, KW)
    conv = jax.lax.conv_general_dilated(
        x.astype(jnp.float32), w_t.astype(jnp.float32),
        window_strides=(1, 1),
        padding=((KH - 1, KH - 1), (KW - 1, KW - 1)),
        lhs_dilation=(2, 2),
        dimension_numbers=('NCHW', 'OIHW', 'NCHW'))
    mean = jnp.mean(conv, axis=(2, 3), keepdims=True)
    var = jnp.mean((conv - mean) ** 2, axis=(2, 3), keepdims=True)
    y = jnp.maximum((conv - mean) * jax.lax.rsqrt(var + 1e-5), 0.0)
    if pad is not None:
        pw_l, pw_r = pad[0], pad[1]
        ph_t, ph_b = (pad[2], pad[3]) if len(pad) >= 4 else (0, 0)
        y = jnp.pad(y, ((0, 0), (0, 0), (ph_t, ph_b), (pw_l, pw_r)))
    if skip_input is not None:
        y = jnp.concatenate([y, skip_input.astype(jnp.float32)], axis=1)
    return y


# ------------------------------------ main ------------------------------------

if __name__ == "__main__":
    key = jax.random.PRNGKey(0)
    k_w, k_x, k_s = jax.random.split(key, 3)

    N, Cin, Cout, H, W = 2, 8, 4, 8, 8
    Hout, Wout = (H - 1) * 2 + 4, (W - 1) * 2 + 4      # 18, 18

    weight = jax.random.normal(k_w, (Cin, Cout, 4, 4), jnp.float32) * 0.1
    x = jax.random.normal(k_x, (N, Cin, H, W), jnp.float32)
    skip = jax.random.normal(k_s, (N, Cout, Hout, Wout), jnp.float32)

    # Case 1: skip concat, no pad (typical UNetUp call)
    out = jax.block_until_ready(unet_up_forward(x, weight, skip_input=skip))
    ref = jax.block_until_ready(unet_up_reference(x, weight, skip_input=skip))
    assert out.shape == (N, 2 * Cout, Hout, Wout), out.shape
    err = float(jnp.max(jnp.abs(out - ref)))
    assert err < 5e-2, err     # bf16 MXU inputs, f32 accumulation

    # Case 2: F.pad path, no skip
    pad = (1, 2, 3, 0)  # (left, right, top, bottom)
    out2 = jax.block_until_ready(unet_up_forward(x, weight, pad=pad))
    ref2 = jax.block_until_ready(unet_up_reference(x, weight, pad=pad))
    assert out2.shape == (N, Cout, Hout + 3, Wout + 3), out2.shape
    err2 = float(jnp.max(jnp.abs(out2 - ref2)))
    assert err2 < 5e-2, err2

    print("KERNEL_OK")
</pallas_src>

<mosaic_0001>
module attributes {stable_mosaic.version = 11 : i64} {
  func.func @_matmul_kernel(%arg0: i32, %arg1: i32, %arg2: i32, %arg3: memref<176x128xbf16, #tpu.memory_space<vmem>>, %arg4: memref<128x128xbf16, #tpu.memory_space<vmem>>, %arg5: memref<176x128xf32, #tpu.memory_space<vmem>>, %arg6: memref<176x128xf32, #tpu.memory_space<vmem>>) attributes {dimension_semantics = [#tpu.dimension_semantics<parallel>, #tpu.dimension_semantics<parallel>, #tpu.dimension_semantics<arbitrary>], iteration_bounds = array<i64: 1, 1, 1>, scalar_prefetch = 0 : i64, scratch_operands = 1 : i64, tpu.core_type = #tpu.core_type<tc>, window_params = [{transform_indices = @transform_0, window_bounds = array<i64: 176, 128>}, {transform_indices = @transform_1, window_bounds = array<i64: 128, 128>}, {transform_indices = @transform_2, window_bounds = array<i64: 176, 128>}]} {
    %c0_i32 = arith.constant 0 : i32
    %0 = arith.cmpi eq, %arg2, %c0_i32 : i32
    %1 = arith.extui %0 : i1 to i32
    %c0_i32_0 = arith.constant 0 : i32
    %2 = arith.cmpi ne, %1, %c0_i32_0 : i32
    scf.if %2 {
      %cst_10 = arith.constant 0.000000e+00 : f32
      %12 = vector.broadcast %cst_10 : f32 to vector<176x128xf32>
      %c0_11 = arith.constant 0 : index
      %c0_12 = arith.constant 0 : index
      %13 = vector.load %arg6[%c0_11, %c0_12] : memref<176x128xf32, #tpu.memory_space<vmem>>, vector<176x128xf32>
      tpu.vector_store %arg6[%c0_11, %c0_12], %12 {strides = array<i32>} : memref<176x128xf32, #tpu.memory_space<vmem>>, vector<176x128xf32>,
    } else {
    }
    %c0 = arith.constant 0 : index
    %c0_1 = arith.constant 0 : index
    %3 = vector.load %arg6[%c0, %c0_1] : memref<176x128xf32, #tpu.memory_space<vmem>>, vector<176x128xf32>
    %c0_2 = arith.constant 0 : index
    %c0_3 = arith.constant 0 : index
    %4 = vector.load %arg3[%c0_2, %c0_3] : memref<176x128xbf16, #tpu.memory_space<vmem>>, vector<176x128xbf16>
    %c0_4 = arith.constant 0 : index
    %c0_5 = arith.constant 0 : index
    %5 = vector.load %arg4[%c0_4, %c0_5] : memref<128x128xbf16, #tpu.memory_space<vmem>>, vector<128x128xbf16>
    %cst = arith.constant dense<0.000000e+00> : vector<176x128xf32>
    %6 = tpu.matmul %4, %5, %cst {dimension_numbers = #tpu.dot_dimension_numbers<[1], [0], [0], [1], [0, 0, 1, 1], [], []>} : vector<176x128xbf16>, vector<128x128xbf16>, vector<176x128xf32> -> vector<176x128xf32>
    %7 = arith.addf %3, %6 : vector<176x128xf32>
    %c0_6 = arith.constant 0 : index
    %c0_7 = arith.constant 0 : index
    %8 = vector.load %arg6[%c0_6, %c0_7] : memref<176x128xf32, #tpu.memory_space<vmem>>, vector<176x128xf32>
    tpu.vector_store %arg6[%c0_6, %c0_7], %7 {strides = array<i32>} : memref<176x128xf32, #tpu.memory_space<vmem>>, vector<176x128xf32>,
    %c0_i32_8 = arith.constant 0 : i32
    %9 = arith.cmpi eq, %arg2, %c0_i32_8 : i32
    %10 = arith.extui %9 : i1 to i32
    %c0_i32_9 = arith.constant 0 : i32
    %11 = arith.cmpi ne, %10, %c0_i32_9 : i32
    scf.if %11 {
      %c0_10 = arith.constant 0 : index
      %c0_11 = arith.constant 0 : index
      %12 = vector.load %arg6[%c0_10, %c0_11] : memref<176x128xf32, #tpu.memory_space<vmem>>, vector<176x128xf32>
      %c0_12 = arith.constant 0 : index
      %c0_13 = arith.constant 0 : index
      %13 = vector.load %arg5[%c0_12, %c0_13] : memref<176x128xf32, #tpu.memory_space<vmem>>, vector<176x128xf32>
      tpu.vector_store %arg5[%c0_12, %c0_13], %12 {strides = array<i32>} : memref<176x128xf32, #tpu.memory_space<vmem>>, vector<176x128xf32>,
    } else {
    }
    return
  }
  func.func @transform_0(%arg0: i32, %arg1: i32, %arg2: i32) -> (i32, i32) {
    %c0_i32 = arith.constant 0 : i32
    return %arg0, %arg2 : i32, i32
  }
  func.func @transform_1(%arg0: i32, %arg1: i32, %arg2: i32) -> (i32, i32) {
    %c0_i32 = arith.constant 0 : i32
    return %arg2, %arg1 : i32, i32
  }
  func.func @transform_2(%arg0: i32, %arg1: i32, %arg2: i32) -> (i32, i32) {
    %c0_i32 = arith.constant 0 : i32
    return %arg0, %arg1 : i32, i32
  }
}

</mosaic_0001>

<llo_original>
// kernel: tpu_custom_call.1
$region0: #{tpu_custom_call.1}
  #allocation0 [shape = 'u32[]', space=smem, size = 0x4, offset = 0x4, fixed_abs, tag = 'smem constant byte address 0x4 - core index']
  #allocation1 [shape = 'u32[144,128]{1,0:T(1,128)}', space=vmem, size = 0x12000, scoped, tag = 'internal scratch']
  #allocation2 [shape = 'f32[176,128]{1,0:T(8,128)}', space=vmem, size = 0x16000, scoped, tag = 'scratch operand']
  %s0 = inlined_call_operand.hbm [shape: bf16[176,128], index: 0, kind: input, shape index: {}]
  %s1 = inlined_call_operand.hbm [shape: bf16[128,128], index: 1, kind: input, shape index: {}]
  %s2 = inlined_call_operand.hbm [shape: f32[176,128], index: 2, kind: output, shape index: {}]
  %s3 = sld [smem:[#allocation0]]
  $region34: #{tpu_custom_call.1} parent=0
    _
  %s5 = ssub.s32 1, %s3
  %s6 = scalar_select 0, %s5, %s3
  $region1: #{tpu_custom_call.1} parent=0
    #allocation3 [shape = 'u8[45056]{0}', space=vmem, size = 0xb000, scoped, tag = 'input window, operand 0, single buffered']
    #allocation4 [shape = 's32[1]{0}', space=sflag, size = 0x4, scoped, tag = 'scoped memory for tpu_custom_call.1']
    #allocation5 [shape = 's32[1]{0}', space=sflag, size = 0x4, scoped, tag = 'scoped memory for tpu_custom_call.1']
    #allocation6 [shape = 'u8[32768]{0}', space=vmem, size = 0x8000, scoped, tag = 'input window, operand 1, single buffered']
    #allocation7 [shape = 's32[1]{0}', space=sflag, size = 0x4, scoped, tag = 'scoped memory for tpu_custom_call.1']
    #allocation8 [shape = 'u8[90112]{0}', space=vmem, size = 0x16000, scoped, tag = 'output window, operand 0, single buffered']
    %7 = vsyncpa [#allocation4], 0
    %8 = vsyncpa [#allocation7], 0
    %9 = vsyncpa [#allocation5], 0
    // Predicated region
    $region2: #{tpu_custom_call.1} parent=1 // pred_check
      _
    $region3: #{tpu_custom_call.1} parent=1 // pred_check_branch
      %11 = sbr.rel (0) target = $region5
    $region4: #{tpu_custom_call.1} parent=1 // pred_region
      %s13 = ssub.s32 1408, 1408
      %14 = vsyncadd [#allocation4], %s13
      %s15 = sshll.u32 [#allocation3], 4
      %s16 = int_to_ptr.vmem [resolvable:$true] %s15
      %21 = dma.hbm_to_vmem [thread:$0]  %s0, 1408, %s16, [#allocation4], 64, 64, 4
    $region5: #{tpu_custom_call.1} parent=1 // pred_fallthru
      _
    // Predicated region
    $region6: #{tpu_custom_call.1} parent=1 // pred_check
      _
    $region7: #{tpu_custom_call.1} parent=1 // pred_check_branch
      %23 = sbr.rel (0) target = $region9
    $region8: #{tpu_custom_call.1} parent=1 // pred_region
      %s25 = ssub.s32 1024, 1024
      %26 = vsyncadd [#allocation7], %s25
      %s27 = sshll.u32 [#allocation6], 4
      %s28 = int_to_ptr.vmem [resolvable:$true] %s27
      %33 = dma.hbm_to_vmem [thread:$0]  %s1, 1024, %s28, [#allocation7], 64, 64, 4
    $region9: #{tpu_custom_call.1} parent=1 // pred_fallthru
      _
    // Predicated region
    $region10: #{tpu_custom_call.1} parent=1 // pred_check
      _
    $region11: #{tpu_custom_call.1} parent=1 // pred_check_branch
      %35 = sbr.rel (0) target = $region13
    $region12: #{tpu_custom_call.1} parent=1 // pred_region
      %36 = dma.done [#allocation4], 1408
    $region13: #{tpu_custom_call.1} parent=1 // pred_fallthru
      _
    // Predicated region
    $region14: #{tpu_custom_call.1} parent=1 // pred_check
      _
    $region15: #{tpu_custom_call.1} parent=1 // pred_check_branch
      %38 = sbr.rel (0) target = $region17
    $region16: #{tpu_custom_call.1} parent=1 // pred_region
      %39 = dma.done [#allocation7], 1024
    $region17: #{tpu_custom_call.1} parent=1 // pred_fallthru
      _
    %p41 = scmp.eq.s32.totalorder 0, 0
    // Predicated region
    $region18: #{tpu_custom_call.1} parent=1 // pred_check
      %p42 = pneg %p41
    $region19: #{tpu_custom_call.1} parent=1 // pred_check_branch
      %44 = sbr.rel (%p42) target = $region21
    $region20: #{tpu_custom_call.1} parent=1 // pred_region
      %45 = vst [vmem:[#allocation2] sm:$0xff] 0.0
      %46 = vst [vmem:[#allocation2 + $0x8] sm:$0xff] 0.0
      %47 = vst [vmem:[#allocation2 + $0x10] sm:$0xff] 0.0
      %48 = vst [vmem:[#allocation2 + $0x18] sm:$0xff] 0.0
      %49 = vst [vmem:[#allocation2 + $0x20] sm:$0xff] 0.0
      %50 = vst [vmem:[#allocation2 + $0x28] sm:$0xff] 0.0
      %51 = vst [vmem:[#allocation2 + $0x30] sm:$0xff] 0.0
      %52 = vst [vmem:[#allocation2 + $0x38] sm:$0xff] 0.0
      %53 = vst [vmem:[#allocation2 + $0x40] sm:$0xff] 0.0
      %54 = vst [vmem:[#allocation2 + $0x48] sm:$0xff] 0.0
      %55 = vst [vmem:[#allocation2 + $0x50] sm:$0xff] 0.0
      %56 = vst [vmem:[#allocation2 + $0x58] sm:$0xff] 0.0
      %57 = vst [vmem:[#allocation2 + $0x60] sm:$0xff] 0.0
      %58 = vst [vmem:[#allocation2 + $0x68] sm:$0xff] 0.0
      %59 = vst [vmem:[#allocation2 + $0x70] sm:$0xff] 0.0
      %60 = vst [vmem:[#allocation2 + $0x78] sm:$0xff] 0.0
      %61 = vst [vmem:[#allocation2 + $0x80] sm:$0xff] 0.0
      %62 = vst [vmem:[#allocation2 + $0x88] sm:$0xff] 0.0
      %63 = vst [vmem:[#allocation2 + $0x90] sm:$0xff] 0.0
      %64 = vst [vmem:[#allocation2 + $0x98] sm:$0xff] 0.0
      %65 = vst [vmem:[#allocation2 + $0xa0] sm:$0xff] 0.0
      %66 = vst [vmem:[#allocation2 + $0xa8] sm:$0xff] 0.0
    $region21: #{tpu_custom_call.1} parent=1 // pred_fallthru
      _
    %v67 = vld [vmem:[#allocation2] sm:$0xff]
    %v68 = vld [vmem:[#allocation2 + $0x8] sm:$0xff]
    %v69 = vld [vmem:[#allocation2 + $0x10] sm:$0xff]
    %v70 = vld [vmem:[#allocation2 + $0x18] sm:$0xff]
    %v71 = vld [vmem:[#allocation2 + $0x20] sm:$0xff]
    %v72 = vld [vmem:[#allocation2 + $0x28] sm:$0xff]
    %v73 = vld [vmem:[#allocation2 + $0x30] sm:$0xff]
    %v74 = vld [vmem:[#allocation2 + $0x38] sm:$0xff]
    %v75 = vld [vmem:[#allocation2 + $0x40] sm:$0xff]
    %v76 = vld [vmem:[#allocation2 + $0x48] sm:$0xff]
    %v77 = vld [vmem:[#allocation2 + $0x50] sm:$0xff]
    %v78 = vld [vmem:[#allocation2 + $0x58] sm:$0xff]
    %v79 = vld [vmem:[#allocation2 + $0x60] sm:$0xff]
    %v80 = vld [vmem:[#allocation2 + $0x68] sm:$0xff]
    %v81 = vld [vmem:[#allocation2 + $0x70] sm:$0xff]
    %v82 = vld [vmem:[#allocation2 + $0x78] sm:$0xff]
    %v83 = vld [vmem:[#allocation2 + $0x80] sm:$0xff]
    %v84 = vld [vmem:[#allocation2 + $0x88] sm:$0xff]
    %v85 = vld [vmem:[#allocation2 + $0x90] sm:$0xff]
    %v86 = vld [vmem:[#allocation2 + $0x98] sm:$0xff]
    %v87 = vld [vmem:[#allocation2 + $0xa0] sm:$0xff]
    %v88 = vld [vmem:[#allocation2 + $0xa8] sm:$0xff]
    %v89 = vld [vmem:[#allocation3] sm:$0xf]
    %v90 = vld [vmem:[#allocation3 + $0x4] sm:$0xf]
    %v91 = vld [vmem:[#allocation3 + $0x8] sm:$0xf]
    %v92 = vld [vmem:[#allocation3 + $0xc] sm:$0xf]
    %v93 = vld [vmem:[#allocation3 + $0x10] sm:$0xf]
    %v94 = vld [vmem:[#allocation3 + $0x14] sm:$0xf]
    %v95 = vld [vmem:[#allocation3 + $0x18] sm:$0xf]
    %v96 = vld [vmem:[#allocation3 + $0x1c] sm:$0xf]
    %v97 = vld [vmem:[#allocation3 + $0x20] sm:$0xf]
    %v98 = vld [vmem:[#allocation3 + $0x24] sm:$0xf]
    %v99 = vld [vmem:[#allocation3 + $0x28] sm:$0xf]
    %v100 = vld [vmem:[#allocation3 + $0x2c] sm:$0xf]
    %v101 = vld [vmem:[#allocation3 + $0x30] sm:$0xf]
    %v102 = vld [vmem:[#allocation3 + $0x34] sm:$0xf]
    %v103 = vld [vmem:[#allocation3 + $0x38] sm:$0xf]
    %v104 = vld [vmem:[#allocation3 + $0x3c] sm:$0xf]
    %v105 = vld [vmem:[#allocation3 + $0x40] sm:$0xf]
    %v106 = vld [vmem:[#allocation3 + $0x44] sm:$0xf]
    %v107 = vld [vmem:[#allocation3 + $0x48] sm:$0xf]
    %v108 = vld [vmem:[#allocation3 + $0x4c] sm:$0xf]
    %v109 = vld [vmem:[#allocation3 + $0x50] sm:$0xf]
    %v110 = vld [vmem:[#allocation3 + $0x54] sm:$0xf]
    %v111 = vld [vmem:[#allocation6] sm:$0xf]
    %v112 = vld [vmem:[#allocation6 + $0x4] sm:$0xf]
    %v113 = vld [vmem:[#allocation6 + $0x8] sm:$0xf]
    %v114 = vld [vmem:[#allocation6 + $0xc] sm:$0xf]
    %v115 = vld [vmem:[#allocation6 + $0x10] sm:$0xf]
    %v116 = vld [vmem:[#allocation6 + $0x14] sm:$0xf]
    %v117 = vld [vmem:[#allocation6 + $0x18] sm:$0xf]
    %v118 = vld [vmem:[#allocation6 + $0x1c] sm:$0xf]
    %v119 = vld [vmem:[#allocation6 + $0x20] sm:$0xf]
    %v120 = vld [vmem:[#allocation6 + $0x24] sm:$0xf]
    %v121 = vld [vmem:[#allocation6 + $0x28] sm:$0xf]
    %v122 = vld [vmem:[#allocation6 + $0x2c] sm:$0xf]
    %v123 = vld [vmem:[#allocation6 + $0x30] sm:$0xf]
    %v124 = vld [vmem:[#allocation6 + $0x34] sm:$0xf]
    %v125 = vld [vmem:[#allocation6 + $0x38] sm:$0xf]
    %v126 = vld [vmem:[#allocation6 + $0x3c] sm:$0xf]
    %v149 = vunpack.c.l.b16 %v89
    %v150 = vunpack.c.l.b16 %v90
    %v151 = vunpack.c.l.b16 %v91
    %v152 = vunpack.c.l.b16 %v92
    %v153 = vunpack.c.l.b16 %v93
    %v154 = vunpack.c.l.b16 %v94
    %v155 = vunpack.c.l.b16 %v95
    %v156 = vunpack.c.l.b16 %v96
    %v157 = vunpack.c.l.b16 %v97
    %v158 = vunpack.c.l.b16 %v98
    %v159 = vunpack.c.l.b16 %v99
    %v160 = vunpack.c.l.b16 %v100
    %v161 = vunpack.c.l.b16 %v101
    %v162 = vunpack.c.l.b16 %v102
    %v163 = vunpack.c.l.b16 %v103
    %v164 = vunpack.c.l.b16 %v104
    %v165 = vunpack.c.l.b16 %v105
    %v166 = vunpack.c.l.b16 %v106
    %v167 = vunpack.c.l.b16 %v107
    %v168 = vunpack.c.l.b16 %v108
    %v169 = vunpack.c.l.b16 %v109
    %v170 = vunpack.c.l.b16 %v110
    %v171 = vpack.c.b16 %v150, %v149
    %v172 = vpack.c.b16 %v152, %v151
    %v173 = vpack.c.b16 %v154, %v153
    %v174 = vpack.c.b16 %v156, %v155
    %v175 = vpack.c.b16 %v158, %v157
    %v176 = vpack.c.b16 %v160, %v159
    %v177 = vpack.c.b16 %v162, %v161
    %v178 = vpack.c.b16 %v164, %v163
    %v179 = vpack.c.b16 %v166, %v165
    %v180 = vpack.c.b16 %v168, %v167
    %v181 = vpack.c.b16 %v170, %v169
    %v209 = vunpack.c.l.b16 %v111
    %v210 = vunpack.c.l.b16 %v112
    %v211 = vunpack.c.l.b16 %v113
    %v212 = vunpack.c.l.b16 %v114
    %v213 = vunpack.c.l.b16 %v115
    %v214 = vunpack.c.l.b16 %v116
    %v215 = vunpack.c.l.b16 %v117
    %v216 = vunpack.c.l.b16 %v118
    %v217 = vunpack.c.l.b16 %v119
    %v218 = vunpack.c.l.b16 %v120
    %v219 = vunpack.c.l.b16 %v121
    %v220 = vunpack.c.l.b16 %v122
    %v221 = vunpack.c.l.b16 %v123
    %v222 = vunpack.c.l.b16 %v124
    %v223 = vunpack.c.l.b16 %v125
    %v224 = vunpack.c.l.b16 %v126
    %v225 = vpack.c.b16 %v210, %v209
    %v226 = vpack.c.b16 %v212, %v211
    %v227 = vpack.c.b16 %v214, %v213
    %v228 = vpack.c.b16 %v216, %v215
    %v229 = vpack.c.b16 %v218, %v217
    %v230 = vpack.c.b16 %v220, %v219
    %v231 = vpack.c.b16 %v222, %v221
    %v232 = vpack.c.b16 %v224, %v223
    %241 = vmatprep.subr.bf16.mxu0 0
    %242 = vmatpush1.bf16.msra.mxu0 %v225
    %243 = vmatprep.subr.bf16.mxu0 0
    %244 = vmatpush1.bf16.msra.mxu0 %v226
    %245 = vmatprep.subr.bf16.mxu0 0
    %246 = vmatpush1.bf16.msra.mxu0 %v227
    %247 = vmatprep.subr.bf16.mxu0 0
    %248 = vmatpush1.bf16.msra.mxu0 %v228
    %249 = vmatprep.subr.bf16.mxu0 0
    %250 = vmatpush1.bf16.msra.mxu0 %v229
    %251 = vmatprep.subr.bf16.mxu0 0
    %252 = vmatpush1.bf16.msra.mxu0 %v230
    %253 = vmatprep.subr.bf16.mxu0 0
    %254 = vmatpush1.bf16.msra.mxu0 %v231
    %255 = vmatprep.subr.bf16.mxu0 0
    %256 = vmatpush1.bf16.msra.mxu0 %v232
    %257 = vmatprep.subr.bf16.mxu0 0
    %258 = vmatpush1.bf16.msra.mxu0 0
    %259 = vmatprep.subr.bf16.mxu0 0
    %260 = vmatpush1.bf16.msra.mxu0 0
    %261 = vmatprep.subr.bf16.mxu0 0
    %262 = vmatpush1.bf16.msra.mxu0 0
    %263 = vmatprep.subr.bf16.mxu0 0
    %264 = vmatpush1.bf16.msra.mxu0 0
    %265 = vmatprep.subr.bf16.mxu0 0
    %266 = vmatpush1.bf16.msra.mxu0 0
    %267 = vmatprep.subr.bf16.mxu0 0
    %268 = vmatpush1.bf16.msra.mxu0 0
    %269 = vmatprep.subr.bf16.mxu0 0
    %270 = vmatpush1.bf16.msra.mxu0 0
    %271 = vmatprep.subr.bf16.mxu0 0
    %272 = vmatpush1.bf16.msra.mxu0 0
    %273 = vmatprep.mubr.bf16.mxu0 0
    %274 = vmatmul.mubr.bf16.gmra.mrb[0].mxu0 %v171
    %v275 = vpop.f32.mrb[0].mxu0
    %v276 = vadd.f32 0.0, %v275
    %v277 = vpop.f32.mrb[0].mxu0
    %v278 = vpop.f32.mrb[0].mxu0
    %v279 = vadd.f32 0.0, %v278
    %v280 = vpop.f32.mrb[0].mxu0
    %281 = vmatprep.mubr.bf16.mxu0 0
    %282 = vmatmul.mubr.bf16.gmra.mrb[0].mxu0 %v172
    %v283 = vpop.f32.mrb[0].mxu0
    %v284 = vadd.f32 0.0, %v283
    %v285 = vpop.f32.mrb[0].mxu0
    %v286 = vpop.f32.mrb[0].mxu0
    %v287 = vadd.f32 0.0, %v286
    %v288 = vpop.f32.mrb[0].mxu0
    %289 = vmatprep.mubr.bf16.mxu0 0
    %290 = vmatmul.mubr.bf16.gmra.mrb[0].mxu0 %v173
    %v291 = vpop.f32.mrb[0].mxu0
    %v292 = vadd.f32 0.0, %v291
    %v293 = vpop.f32.mrb[0].mxu0
    %v294 = vpop.f32.mrb[0].mxu0
    %v295 = vadd.f32 0.0, %v294
    %v296 = vpop.f32.mrb[0].mxu0
    %297 = vmatprep.mubr.bf16.mxu0 0
    %298 = vmatmul.mubr.bf16.gmra.mrb[0].mxu0 %v174
    %v299 = vpop.f32.mrb[0].mxu0
    %v300 = vadd.f32 0.0, %v299
    %v301 = vpop.f32.mrb[0].mxu0
    %v302 = vpop.f32.mrb[0].mxu0
    %v303 = vadd.f32 0.0, %v302
    %v304 = vpop.f32.mrb[0].mxu0
    %305 = vmatprep.mubr.bf16.mxu0 0
    %306 = vmatmul.mubr.bf16.gmra.mrb[0].mxu0 %v175
    %v307 = vpop.f32.mrb[0].mxu0
    %v308 = vadd.f32 0.0, %v307
    %v309 = vpop.f32.mrb[0].mxu0
    %v310 = vpop.f32.mrb[0].mxu0
    %v311 = vadd.f32 0.0, %v310
    %v312 = vpop.f32.mrb[0].mxu0
    %313 = vmatprep.mubr.bf16.mxu0 0
    %314 = vmatmul.mubr.bf16.gmra.mrb[0].mxu0 %v176
    %v315 = vpop.f32.mrb[0].mxu0
    %v316 = vadd.f32 0.0, %v315
    %v317 = vpop.f32.mrb[0].mxu0
    %v318 = vpop.f32.mrb[0].mxu0
    %v319 = vadd.f32 0.0, %v318
    %v320 = vpop.f32.mrb[0].mxu0
    %321 = vmatprep.mubr.bf16.mxu0 0
    %322 = vmatmul.mubr.bf16.gmra.mrb[0].mxu0 %v177
    %v323 = vpop.f32.mrb[0].mxu0
    %v324 = vadd.f32 0.0, %v323
    %v325 = vpop.f32.mrb[0].mxu0
    %v326 = vpop.f32.mrb[0].mxu0
    %v327 = vadd.f32 0.0, %v326
    %v328 = vpop.f32.mrb[0].mxu0
    %329 = vmatprep.mubr.bf16.mxu0 0
    %330 = vmatmul.mubr.bf16.gmra.mrb[0].mxu0 %v178
    %v331 = vpop.f32.mrb[0].mxu0
    %v332 = vadd.f32 0.0, %v331
    %v333 = vpop.f32.mrb[0].mxu0
    %v334 = vpop.f32.mrb[0].mxu0
    %v335 = vadd.f32 0.0, %v334
    %v336 = vpop.f32.mrb[0].mxu0
    %337 = vmatprep.mubr.bf16.mxu0 0
    %338 = vmatmul.mubr.bf16.gmra.mrb[0].mxu0 %v179
    %v339 = vpop.f32.mrb[0].mxu0
    %v340 = vadd.f32 0.0, %v339
    %v341 = vpop.f32.mrb[0].mxu0
    %v342 = vpop.f32.mrb[0].mxu0
    %v343 = vadd.f32 0.0, %v342
    %v344 = vpop.f32.mrb[0].mxu0
    %345 = vmatprep.mubr.bf16.mxu0 0
    %346 = vmatmul.mubr.bf16.gmra.mrb[0].mxu0 %v180
    %v347 = vpop.f32.mrb[0].mxu0
    %v348 = vadd.f32 0.0, %v347
    %v349 = vpop.f32.mrb[0].mxu0
    %v350 = vpop.f32.mrb[0].mxu0
    %v351 = vadd.f32 0.0, %v350
    %v352 = vpop.f32.mrb[0].mxu0
    %353 = vmatprep.mubr.bf16.mxu0 0
    %354 = vmatmul.mubr.bf16.gmra.mrb[0].mxu0 %v181
    %v355 = vpop.f32.mrb[0].mxu0
    %v356 = vadd.f32 0.0, %v355
    %v357 = vpop.f32.mrb[0].mxu0
    %v358 = vpop.f32.mrb[0].mxu0
    %v359 = vadd.f32 0.0, %v358
    %v360 = vpop.f32.mrb[0].mxu0
    %361 = vdwg.mxu0
    %v362 = vadd.f32 %v67, %v276
    %v363 = vadd.f32 %v68, %v279
    %v364 = vadd.f32 %v69, %v284
    %v365 = vadd.f32 %v70, %v287
    %v366 = vadd.f32 %v71, %v292
    %v367 = vadd.f32 %v72, %v295
    %v368 = vadd.f32 %v73, %v300
    %v369 = vadd.f32 %v74, %v303
    %v370 = vadd.f32 %v75, %v308
    %v371 = vadd.f32 %v76, %v311
    %v372 = vadd.f32 %v77, %v316
    %v373 = vadd.f32 %v78, %v319
    %v374 = vadd.f32 %v79, %v324
    %v375 = vadd.f32 %v80, %v327
    %v376 = vadd.f32 %v81, %v332
    %v377 = vadd.f32 %v82, %v335
    %v378 = vadd.f32 %v83, %v340
    %v379 = vadd.f32 %v84, %v343
    %v380 = vadd.f32 %v85, %v348
    %v381 = vadd.f32 %v86, %v351
    %v382 = vadd.f32 %v87, %v356
    %v383 = vadd.f32 %v88, %v359
    %384 = vst [vmem:[#allocation2] sm:$0xff] %v362
    %385 = vst [vmem:[#allocation2 + $0x8] sm:$0xff] %v363
    %386 = vst [vmem:[#allocation2 + $0x10] sm:$0xff] %v364
    %387 = vst [vmem:[#allocation2 + $0x18] sm:$0xff] %v365
    %388 = vst [vmem:[#allocation2 + $0x20] sm:$0xff] %v366
    %389 = vst [vmem:[#allocation2 + $0x28] sm:$0xff] %v367
    %390 = vst [vmem:[#allocation2 + $0x30] sm:$0xff] %v368
    %391 = vst [vmem:[#allocation2 + $0x38] sm:$0xff] %v369
    %392 = vst [vmem:[#allocation2 + $0x40] sm:$0xff] %v370
    %393 = vst [vmem:[#allocation2 + $0x48] sm:$0xff] %v371
    %394 = vst [vmem:[#allocation2 + $0x50] sm:$0xff] %v372
    %395 = vst [vmem:[#allocation2 + $0x58] sm:$0xff] %v373
    %396 = vst [vmem:[#allocation2 + $0x60] sm:$0xff] %v374
    %397 = vst [vmem:[#allocation2 + $0x68] sm:$0xff] %v375
    %398 = vst [vmem:[#allocation2 + $0x70] sm:$0xff] %v376
    %399 = vst [vmem:[#allocation2 + $0x78] sm:$0xff] %v377
    %400 = vst [vmem:[#allocation2 + $0x80] sm:$0xff] %v378
    %401 = vst [vmem:[#allocation2 + $0x88] sm:$0xff] %v379
    %402 = vst [vmem:[#allocation2 + $0x90] sm:$0xff] %v380
    %403 = vst [vmem:[#allocation2 + $0x98] sm:$0xff] %v381
    %404 = vst [vmem:[#allocation2 + $0xa0] sm:$0xff] %v382
    %405 = vst [vmem:[#allocation2 + $0xa8] sm:$0xff] %v383
    // Predicated region
    $region22: #{tpu_custom_call.1} parent=1 // pred_check
      %p406 = pneg %p41
    $region23: #{tpu_custom_call.1} parent=1 // pred_check_branch
      %408 = sbr.rel (%p406) target = $region25
    $region24: #{tpu_custom_call.1} parent=1 // pred_region
      %v409 = vld [vmem:[#allocation2] sm:$0xff]
      %v410 = vld [vmem:[#allocation2 + $0x8] sm:$0xff]
      %v411 = vld [vmem:[#allocation2 + $0x10] sm:$0xff]
      %v412 = vld [vmem:[#allocation2 + $0x18] sm:$0xff]
      %v413 = vld [vmem:[#allocation2 + $0x20] sm:$0xff]
      %v414 = vld [vmem:[#allocation2 + $0x28] sm:$0xff]
      %v415 = vld [vmem:[#allocation2 + $0x30] sm:$0xff]
      %v416 = vld [vmem:[#allocation2 + $0x38] sm:$0xff]
      %v417 = vld [vmem:[#allocation2 + $0x40] sm:$0xff]
      %v418 = vld [vmem:[#allocation2 + $0x48] sm:$0xff]
      %v419 = vld [vmem:[#allocation2 + $0x50] sm:$0xff]
      %v420 = vld [vmem:[#allocation2 + $0x58] sm:$0xff]
      %v421 = vld [vmem:[#allocation2 + $0x60] sm:$0xff]
      %v422 = vld [vmem:[#allocation2 + $0x68] sm:$0xff]
      %v423 = vld [vmem:[#allocation2 + $0x70] sm:$0xff]
      %v424 = vld [vmem:[#allocation2 + $0x78] sm:$0xff]
      %v425 = vld [vmem:[#allocation2 + $0x80] sm:$0xff]
      %v426 = vld [vmem:[#allocation2 + $0x88] sm:$0xff]
      %v427 = vld [vmem:[#allocation2 + $0x90] sm:$0xff]
      %v428 = vld [vmem:[#allocation2 + $0x98] sm:$0xff]
      %v429 = vld [vmem:[#allocation2 + $0xa0] sm:$0xff]
      %v430 = vld [vmem:[#allocation2 + $0xa8] sm:$0xff]
      %431 = vst [vmem:[#allocation8] sm:$0xff] %v409
      %432 = vst [vmem:[#allocation8 + $0x8] sm:$0xff] %v410
      %433 = vst [vmem:[#allocation8 + $0x10] sm:$0xff] %v411
      %434 = vst [vmem:[#allocation8 + $0x18] sm:$0xff] %v412
      %435 = vst [vmem:[#allocation8 + $0x20] sm:$0xff] %v413
      %436 = vst [vmem:[#allocation8 + $0x28] sm:$0xff] %v414
      %437 = vst [vmem:[#allocation8 + $0x30] sm:$0xff] %v415
      %438 = vst [vmem:[#allocation8 + $0x38] sm:$0xff] %v416
      %439 = vst [vmem:[#allocation8 + $0x40] sm:$0xff] %v417
      %440 = vst [vmem:[#allocation8 + $0x48] sm:$0xff] %v418
      %441 = vst [vmem:[#allocation8 + $0x50] sm:$0xff] %v419
      %442 = vst [vmem:[#allocation8 + $0x58] sm:$0xff] %v420
      %443 = vst [vmem:[#allocation8 + $0x60] sm:$0xff] %v421
      %444 = vst [vmem:[#allocation8 + $0x68] sm:$0xff] %v422
      %445 = vst [vmem:[#allocation8 + $0x70] sm:$0xff] %v423
      %446 = vst [vmem:[#allocation8 + $0x78] sm:$0xff] %v424
      %447 = vst [vmem:[#allocation8 + $0x80] sm:$0xff] %v425
      %448 = vst [vmem:[#allocation8 + $0x88] sm:$0xff] %v426
      %449 = vst [vmem:[#allocation8 + $0x90] sm:$0xff] %v427
      %450 = vst [vmem:[#allocation8 + $0x98] sm:$0xff] %v428
      %451 = vst [vmem:[#allocation8 + $0xa0] sm:$0xff] %v429
      %452 = vst [vmem:[#allocation8 + $0xa8] sm:$0xff] %v430
    $region25: #{tpu_custom_call.1} parent=1 // pred_fallthru
      _
    // Predicated region
    $region26: #{tpu_custom_call.1} parent=1 // pred_check
      _
    $region27: #{tpu_custom_call.1} parent=1 // pred_check_branch
      %454 = sbr.rel (0) target = $region29
    $region28: #{tpu_custom_call.1} parent=1 // pred_region
      %s456 = ssub.s32 2816, 2816
      %457 = vsyncadd [#allocation5], %s456
      %s458 = sshll.u32 [#allocation8], 4
      %s459 = int_to_ptr.vmem [resolvable:$true] %s458
      %464 = dma.vmem_to_hbm [thread:$0]  %s459, 2816, %s2, [#allocation5], 128, 128, 8
    $region29: #{tpu_custom_call.1} parent=1 // pred_fallthru
      _
    // Predicated region
    $region30: #{tpu_custom_call.1} parent=1 // pred_check
      _
    $region31: #{tpu_custom_call.1} parent=1 // pred_check_branch
      %466 = sbr.rel (0) target = $region33
    $region32: #{tpu_custom_call.1} parent=1 // pred_region
      %467 = dma.done [#allocation5], 2816
    $region33: #{tpu_custom_call.1} parent=1 // pred_fallthru
      _
    %468 = vsyncpa [#allocation4], 1
    %469 = vsyncpa [#allocation7], 1
    %470 = vsyncpa [#allocation5], 1

</llo_original>
